<compile_context>
chip_gen: v7x
topology: tpu7x:2x2x1
jax: 0.10.0
libtpu: 0.0.40
codegen_flags: <defaults>
</compile_context>

<pallas_src>
import jax
import jax.numpy as jnp
from jax.experimental import pallas as pl
from jax.experimental.pallas import tpu as pltpu


def _round_up(a: int, b: int) -> int:
    return (a + b - 1) // b * b


def layer_scale_kernel(w_ref, x_ref, o_ref):
    # w_ref: (TR, 1)    per-row (= per (n, c)) scale, in the weight's dtype
    # x_ref: (TR, THW)  activation tile
    # o_ref: (TR, THW)  output tile (promoted dtype)
    o_ref[...] = (x_ref[...] * w_ref[...]).astype(o_ref.dtype)


def layer_scale(x, weight):
    """LayerScale forward: out = x * weight.view(-1, 1, 1).

    x: (N, C, H, W), weight: (C,) -> (N, C, H, W) in the promoted dtype.
    """
    N, C, H, W = x.shape
    hw = H * W
    R = N * C

    x_dtype = x.dtype
    w_dtype = weight.dtype
    # Match PyTorch type promotion (x * weight): multiply + output in the
    # promoted dtype instead of force-casting weight to x's dtype.
    out_dtype = jnp.promote_types(x_dtype, w_dtype)

    x_item = jnp.dtype(x_dtype).itemsize
    o_item = jnp.dtype(out_dtype).itemsize
    w_item = jnp.dtype(w_dtype).itemsize
    # Sublane packing multiple for x: f32 -> 8, bf16 -> 16, int8/fp8 -> 32.
    sub = {4: 8, 2: 16, 1: 32}.get(x_item, 8)

    # --- Tile sizing (byte budget, dtype-independent) ----------------------
    TARGET_BYTES = 4 * 1024 * 1024  # per x tile

    # Lane (last) dim: multiple of 128 for unmasked vector stores, or the
    # full extent when hw < 128 (full-dim block is always legal).
    lane_cap = max(128, (TARGET_BYTES // (sub * x_item)) // 128 * 128)
    if hw < 128:
        THW = hw
    else:
        THW = min(_round_up(hw, 128), lane_cap)

    # Row (second-to-last) dim: sublane-aligned, sized so TR*THW*itemsize is
    # close to the target budget; capped at the (rounded) total row count.
    rows_for_target = max(1, TARGET_BYTES // (THW * x_item))
    TR = max(sub, rows_for_target // sub * sub)
    TR = min(TR, _round_up(R, sub))

    grid = (pl.cdiv(R, TR), pl.cdiv(hw, THW))

    # --- Operands: no padding, Pallas masks the partial edge blocks --------
    x2 = x.reshape(R, hw)  # contiguous collapse -> free view, no HBM copy
    # Per-row scale: row n*C + c gets weight[c].  Only N*C elements.
    w2 = jnp.broadcast_to(weight[None, :], (N, C)).reshape(R, 1)

    # --- VMEM budget: double-buffered x + out tiles + tiny weight tile -----
    tile_bytes = TR * THW * (x_item + o_item) + TR * w_item
    needed = 2 * tile_bytes
    vmem_limit = int(min(max(2 * needed, 16 * 1024 * 1024), 48 * 1024 * 1024))

    # Mirror PyTorch inplace=True: donate x's buffer to the output (halves
    # peak HBM footprint).  Only valid when no dtype promotion happens.
    io_aliases = {1: 0} if out_dtype == x_dtype else {}

    out = pl.pallas_call(
        layer_scale_kernel,
        out_shape=jax.ShapeDtypeStruct((R, hw), out_dtype),
        grid=grid,
        in_specs=[
            # weight: constant block index along the spatial axis.
            pl.BlockSpec((TR, 1), lambda r, s: (r, 0)),
            pl.BlockSpec((TR, THW), lambda r, s: (r, s)),
        ],
        out_specs=pl.BlockSpec((TR, THW), lambda r, s: (r, s)),
        input_output_aliases=io_aliases,
        compiler_params=pltpu.CompilerParams(
            dimension_semantics=("parallel", "parallel"),
            vmem_limit_bytes=vmem_limit,
        ),
    )(w2, x2)

    return out.reshape(N, C, H, W)


if __name__ == "__main__":
    key = jax.random.PRNGKey(0)

    N, C, H, W = 2, 4, 16, 16
    init_values = 1e-5

    x = jax.random.normal(key, (N, C, H, W), dtype=jnp.float32)
    # Deterministic parameter init, matching nn.Parameter(torch.ones(dim) * init_values)
    weight = jnp.ones((C,), dtype=jnp.float32) * init_values

    out = layer_scale(x, weight)
    out = jax.block_until_ready(out)

    # Reference check against plain JAX broadcast (same semantics as PyTorch).
    ref = x * weight[None, :, None, None]
    assert out.shape == (N, C, H, W)
    assert out.dtype == ref.dtype
    assert jnp.allclose(out, ref, rtol=1e-6, atol=1e-6)

    print("KERNEL_OK")
</pallas_src>

<mosaic_0001>
module attributes {stable_mosaic.version = 11 : i64} {
  func.func @layer_scale_kernel(%arg0: i32, %arg1: i32, %arg2: memref<8x1xf32, #tpu.memory_space<vmem>>, %arg3: memref<8x256xf32, #tpu.memory_space<vmem>>, %arg4: memref<8x256xf32, #tpu.memory_space<vmem>>) attributes {dimension_semantics = [#tpu.dimension_semantics<parallel>, #tpu.dimension_semantics<parallel>], iteration_bounds = array<i64: 1, 1>, scalar_prefetch = 0 : i64, scratch_operands = 0 : i64, tpu.core_type = #tpu.core_type<tc>, window_params = [{transform_indices = @transform_0, window_bounds = array<i64: 8, 1>}, {transform_indices = @transform_1, window_bounds = array<i64: 8, 256>}, {transform_indices = @transform_2, window_bounds = array<i64: 8, 256>}]} {
    %c0 = arith.constant 0 : index
    %c0_0 = arith.constant 0 : index
    %0 = vector.load %arg3[%c0, %c0_0] : memref<8x256xf32, #tpu.memory_space<vmem>>, vector<8x256xf32>
    %c0_1 = arith.constant 0 : index
    %c0_2 = arith.constant 0 : index
    %1 = vector.load %arg2[%c0_1, %c0_2] : memref<8x1xf32, #tpu.memory_space<vmem>>, vector<8x1xf32>
    %2 = vector.broadcast %1 : vector<8x1xf32> to vector<8x256xf32>
    %3 = arith.mulf %0, %2 : vector<8x256xf32>
    %c0_3 = arith.constant 0 : index
    %c0_4 = arith.constant 0 : index
    %4 = vector.load %arg4[%c0_3, %c0_4] : memref<8x256xf32, #tpu.memory_space<vmem>>, vector<8x256xf32>
    tpu.vector_store %arg4[%c0_3, %c0_4], %3 {strides = array<i32>} : memref<8x256xf32, #tpu.memory_space<vmem>>, vector<8x256xf32>,
    return
  }
  func.func @transform_0(%arg0: i32, %arg1: i32) -> (i32, i32) {
    %c0_i32 = arith.constant 0 : i32
    %c0_i32_0 = arith.constant 0 : i32
    return %arg0, %c0_i32 : i32, i32
  }
  func.func @transform_1(%arg0: i32, %arg1: i32) -> (i32, i32) {
    %c0_i32 = arith.constant 0 : i32
    return %arg0, %arg1 : i32, i32
  }
  func.func @transform_2(%arg0: i32, %arg1: i32) -> (i32, i32) {
    %c0_i32 = arith.constant 0 : i32
    return %arg0, %arg1 : i32, i32
  }
}

</mosaic_0001>

<llo_original>
// kernel: tpu_custom_call.1
$region0: #{tpu_custom_call.1}
  #allocation0 [shape = 'u32[]', space=smem, size = 0x4, offset = 0x4, fixed_abs, tag = 'smem constant byte address 0x4 - core index']
  #allocation1 [shape = 'u32[144,128]{1,0:T(1,128)}', space=vmem, size = 0x12000, scoped, tag = 'internal scratch']
  %s0 = inlined_call_operand.vmem [shape: f32[8,1], index: 0, kind: input, shape index: {}]
  %s1 = inlined_call_operand.hbm [shape: f32[8,256], index: 1, kind: input, shape index: {}, may-alias: {1,2}]
  %s2 = inlined_call_operand.hbm [shape: f32[8,256], index: 2, kind: output, shape index: {}, may-alias: {1,2}]
  %s3 = sld [smem:[#allocation0]]
  $region22: #{tpu_custom_call.1} parent=0
    _
  %s5 = ssub.s32 1, %s3
  %s6 = scalar_select 0, %s5, %s3
  $region1: #{tpu_custom_call.1} parent=0
    #allocation2 [shape = 'u8[8192]{0}', space=vmem, size = 0x2000, scoped, tag = 'input window, operand 1, single buffered']
    #allocation3 [shape = 's32[1]{0}', space=sflag, size = 0x4, scoped, tag = 'scoped memory for tpu_custom_call.1']
    #allocation4 [shape = 's32[1]{0}', space=sflag, size = 0x4, scoped, tag = 'scoped memory for tpu_custom_call.1']
    #allocation5 [shape = 'u8[8192]{0}', space=vmem, size = 0x2000, scoped, tag = 'output window, operand 0, single buffered']
    %7 = vsyncpa [#allocation3], 0
    %8 = vsyncpa [#allocation4], 0
    // Predicated region
    $region2: #{tpu_custom_call.1} parent=1 // pred_check
      _
    $region3: #{tpu_custom_call.1} parent=1 // pred_check_branch
      %10 = sbr.rel (0) target = $region5
    $region4: #{tpu_custom_call.1} parent=1 // pred_region
      _
    $region5: #{tpu_custom_call.1} parent=1 // pred_fallthru
      _
    // Predicated region
    $region6: #{tpu_custom_call.1} parent=1 // pred_check
      _
    $region7: #{tpu_custom_call.1} parent=1 // pred_check_branch
      %12 = sbr.rel (0) target = $region9
    $region8: #{tpu_custom_call.1} parent=1 // pred_region
      %s14 = ssub.s32 256, 256
      %15 = vsyncadd [#allocation3], %s14
      %s17 = sshll.u32 [#allocation2], 4
      %s18 = int_to_ptr.vmem [resolvable:$true] %s17
      %20 = dma.hbm_to_vmem [thread:$0]  %s1, 256, %s18, [#allocation3]
    $region9: #{tpu_custom_call.1} parent=1 // pred_fallthru
      _
    // Predicated region
    $region10: #{tpu_custom_call.1} parent=1 // pred_check
      _
    $region11: #{tpu_custom_call.1} parent=1 // pred_check_branch
      %22 = sbr.rel (0) target = $region13
    $region12: #{tpu_custom_call.1} parent=1 // pred_region
      %23 = dma.done [#allocation3], 256
    $region13: #{tpu_custom_call.1} parent=1 // pred_fallthru
      _
    %v24 = vld [vmem:[#allocation2] sm:$0xff]
    %v25 = vld [vmem:[#allocation2 + $0x8] sm:$0xff]
    %v26 = vld [vmem:[%s0] sm:$0xff]
    %28 = vset.pattern.permute.xlu0 0
    %29 = vperm.xlu0 %28, %v26
    %v30 = vpop.permute.xlu0 %29
    %v32 = vmul.f32 %v24, %v30
    %v33 = vmul.f32 %v25, %v30
    %34 = vst [vmem:[#allocation5] sm:$0xff] %v32
    %35 = vst [vmem:[#allocation5 + $0x8] sm:$0xff] %v33
    // Predicated region
    $region14: #{tpu_custom_call.1} parent=1 // pred_check
      _
    $region15: #{tpu_custom_call.1} parent=1 // pred_check_branch
      %37 = sbr.rel (0) target = $region17
    $region16: #{tpu_custom_call.1} parent=1 // pred_region
      %s39 = ssub.s32 256, 256
      %40 = vsyncadd [#allocation4], %s39
      %s42 = sshll.u32 [#allocation5], 4
      %s43 = int_to_ptr.vmem [resolvable:$true] %s42
      %45 = dma.vmem_to_hbm [thread:$0]  %s43, 256, %s2, [#allocation4]
    $region17: #{tpu_custom_call.1} parent=1 // pred_fallthru
      _
    // Predicated region
    $region18: #{tpu_custom_call.1} parent=1 // pred_check
      _
    $region19: #{tpu_custom_call.1} parent=1 // pred_check_branch
      %47 = sbr.rel (0) target = $region21
    $region20: #{tpu_custom_call.1} parent=1 // pred_region
      %48 = dma.done [#allocation4], 256
    $region21: #{tpu_custom_call.1} parent=1 // pred_fallthru
      _
    %49 = vsyncpa [#allocation3], 1
    %50 = vsyncpa [#allocation4], 1

</llo_original>
